<compile_context>
chip_gen: v6e
topology: v6e:2x2x1
jax: 0.10.0
libtpu: 0.0.40
codegen_flags: <defaults>
</compile_context>

<pallas_src>
import math

import jax
import jax.numpy as jnp
from jax.experimental import pallas as pl
from jax.experimental.pallas import tpu as pltpu

H1 = 400
H2 = 300

_LANE = 128
_SUBLANE = 8


def _round_up(n, m):
    return ((n + m - 1) // m) * m


def _actor_kernel(x_ref, w1_ref, b1_ref, w2_ref, b2_ref, w3_ref, b3_ref,
                  act_ref, en_ref):
    """One batch tile of the full forward pass.

    x_ref is f32 (cast to bf16 here, on the VPU).  Matmuls: bf16 x bf16 -> f32
    (MXU).  Bias-add / relu / tanh in f32.  Outputs are stored at their logical
    feature widths (en: 300, act: action_dim), en in bf16.
    """
    x = x_ref[...].astype(jnp.bfloat16)                       # [TB, SD]

    # fc1 + relu
    h1 = jnp.dot(x, w1_ref[...], preferred_element_type=jnp.float32)
    h1 = jnp.maximum(h1 + b1_ref[...], 0.0)                   # f32 [TB, H1_P]

    # fc2 + relu  -> en_input   (padded lanes of h2 are exactly zero)
    h2 = jnp.dot(h1.astype(jnp.bfloat16), w2_ref[...],
                 preferred_element_type=jnp.float32)
    h2 = jnp.maximum(h2 + b2_ref[...], 0.0)                   # f32 [TB, H2_P]
    en_ref[...] = h2[:, : en_ref.shape[-1]].astype(en_ref.dtype)

    # fc3 + tanh  (slice the lane-padded result down to action_dim)
    a = jnp.dot(h2.astype(jnp.bfloat16), w3_ref[...],
                preferred_element_type=jnp.float32)           # f32 [TB, AD_P]
    ad = act_ref.shape[-1]
    act_ref[...] = jnp.tanh(a[:, :ad] + b3_ref[...]).astype(act_ref.dtype)


def prepare_params(params):
    """Pad hidden/action feature dims to lane multiples (zeros, mathematically
    inert) and cast weights to bf16.  state_dim is left at its logical size.

    Input `params` holds logical-shape f32 arrays:
      w1 [SD, 400], b1 [1, 400], w2 [400, 300], b2 [1, 300],
      w3 [300, AD], b3 [1, AD]   (weights already transposed vs. PyTorch).
    """
    sd = params["w1"].shape[0]
    ad = params["w3"].shape[1]
    h1_p = _round_up(H1, _LANE)        # 512
    h2_p = _round_up(H2, _LANE)        # 384
    ad_p = _round_up(ad, _LANE)

    def pad2(a, rows, cols):
        return jnp.pad(a, ((0, rows - a.shape[0]), (0, cols - a.shape[1])))

    return {
        "w1": pad2(params["w1"], sd, h1_p).astype(jnp.bfloat16),
        "b1": pad2(params["b1"], 1, h1_p).astype(jnp.float32),
        "w2": pad2(params["w2"], h1_p, h2_p).astype(jnp.bfloat16),
        "b2": pad2(params["b2"], 1, h2_p).astype(jnp.float32),
        "w3": pad2(params["w3"], h2_p, ad_p).astype(jnp.bfloat16),
        "b3": params["b3"].astype(jnp.float32),               # (1, AD), unpadded
    }


def actor_en_forward(x, kparams, *, batch_tile=1024, en_dtype=jnp.bfloat16):
    """x: [B, state_dim] float32.  kparams: output of prepare_params().

    Returns (act [B, action_dim] f32, en_input [B, 300] en_dtype).
    """
    B, sd = x.shape
    assert kparams["w1"].shape[0] == sd
    h1_p = kparams["w1"].shape[1]
    h2_p = kparams["w2"].shape[1]
    ad_p = kparams["w3"].shape[1]
    ad = kparams["b3"].shape[1]

    # ---- batch tiling -----------------------------------------------------
    # Balanced tiles minimise padded rows; >=2 tiles for larger batches so the
    # "parallel" grid axis can shard across both TensorCores on v7x.
    nt = pl.cdiv(B, batch_tile)
    if nt < 2 and B >= 256:
        nt = 2
    if nt == 1:
        tb = B                       # full-array block: no padding, legal size
    else:
        tb = _round_up(pl.cdiv(B, nt), _SUBLANE)
        nt = pl.cdiv(B, tb)
    b_pad = nt * tb

    xp = x if b_pad == B else jnp.pad(x, ((0, b_pad - B), (0, 0)))

    in_specs = [
        pl.BlockSpec((tb, sd), lambda i: (i, 0)),       # x tile (f32, cast in-kernel)
        pl.BlockSpec((sd, h1_p), lambda i: (0, 0)),     # weights/biases: constant
        pl.BlockSpec((1, h1_p), lambda i: (0, 0)),      # index maps -> stay VMEM-
        pl.BlockSpec((h1_p, h2_p), lambda i: (0, 0)),   # resident across grid steps
        pl.BlockSpec((1, h2_p), lambda i: (0, 0)),
        pl.BlockSpec((h2_p, ad_p), lambda i: (0, 0)),
        pl.BlockSpec((1, ad), lambda i: (0, 0)),
    ]
    out_specs = (
        pl.BlockSpec((tb, ad), lambda i: (i, 0)),       # act at logical width
        pl.BlockSpec((tb, H2), lambda i: (i, 0)),       # en_input at logical 300
    )
    out_shape = (
        jax.ShapeDtypeStruct((b_pad, ad), jnp.float32),
        jax.ShapeDtypeStruct((b_pad, H2), en_dtype),
    )

    flops = 2 * b_pad * (sd * h1_p + h1_p * h2_p + h2_p * ad_p)
    weight_bytes = sum(int(v.size) * v.dtype.itemsize for v in kparams.values())
    bytes_accessed = (int(xp.size) * 4 + weight_bytes
                      + b_pad * ad * 4
                      + b_pad * H2 * jnp.dtype(en_dtype).itemsize)
    cost = pl.CostEstimate(flops=flops, transcendentals=b_pad * ad,
                           bytes_accessed=bytes_accessed)

    act_p, en_p = pl.pallas_call(
        _actor_kernel,
        out_shape=out_shape,
        grid=(nt,),
        in_specs=in_specs,
        out_specs=out_specs,
        compiler_params=pltpu.CompilerParams(
            dimension_semantics=("parallel",)),
        cost_estimate=cost,
    )(xp, kparams["w1"], kparams["b1"], kparams["w2"], kparams["b2"],
      kparams["w3"], kparams["b3"])

    if b_pad != B:
        # Padded rows hold relu(b1)-propagated garbage by construction; drop
        # them.  A consumer that tolerates padded rows can skip this slice.
        act_p = act_p[:B]
        en_p = en_p[:B]
    return act_p, en_p


def init_params(key, state_dim, action_dim):
    """Deterministic init mirroring the PyTorch module's __init__ (f32, logical shapes)."""
    ks = jax.random.split(key, 6)

    def xavier_uniform(k, fan_in, fan_out):
        # torch.nn.init.xavier_uniform_ on weight of shape (out, in)
        bound = math.sqrt(6.0 / (fan_in + fan_out))
        return jax.random.uniform(k, (fan_in, fan_out), jnp.float32, -bound, bound)

    def default_bias(k, fan_in, fan_out):
        # torch default Linear bias init: U(-1/sqrt(fan_in), 1/sqrt(fan_in))
        bound = 1.0 / math.sqrt(fan_in)
        return jax.random.uniform(k, (1, fan_out), jnp.float32, -bound, bound)

    w1 = xavier_uniform(ks[0], state_dim, H1)
    b1 = default_bias(ks[1], state_dim, H1)
    w2 = xavier_uniform(ks[2], H1, H2)
    b2 = default_bias(ks[3], H1, H2)
    # fc3 weight: uniform(-0.003, 0.003)
    w3 = jax.random.uniform(ks[4], (H2, action_dim), jnp.float32, -0.003, 0.003)
    b3 = default_bias(ks[5], H2, action_dim)
    return {"w1": w1, "b1": b1, "w2": w2, "b2": b2, "w3": w3, "b3": b3}


def reference_forward(x, p):
    """Pure-JAX reference with the same bf16-matmul / f32-accumulate numerics."""
    def mm(a, w):
        return jnp.dot(a.astype(jnp.bfloat16), w.astype(jnp.bfloat16),
                       preferred_element_type=jnp.float32)
    h1 = jax.nn.relu(mm(x, p["w1"]) + p["b1"])
    h2 = jax.nn.relu(mm(h1, p["w2"]) + p["b2"])
    act = jnp.tanh(mm(h2, p["w3"]) + p["b3"])
    return act, h2


def _check(x, params, kparams, action_dim):
    act, en = actor_en_forward(x, kparams)
    jax.block_until_ready((act, en))
    act_ref, en_ref = reference_forward(x, params)
    B = x.shape[0]
    assert act.shape == (B, action_dim)
    assert en.shape == (B, H2)
    assert jnp.allclose(act, act_ref, atol=2e-3, rtol=2e-3), \
        float(jnp.max(jnp.abs(act - act_ref)))
    en_f32 = en.astype(jnp.float32)
    assert jnp.allclose(en_f32, en_ref, atol=2e-2, rtol=2e-2), \
        float(jnp.max(jnp.abs(en_f32 - en_ref)))


if __name__ == "__main__":
    key = jax.random.PRNGKey(0)
    k_param, k_x1, k_x2 = jax.random.split(key, 3)

    state_dim, action_dim = 32, 4
    params = init_params(k_param, state_dim, action_dim)
    kparams = prepare_params(params)

    # Small case: single tile, no batch padding, no wrapper slices at all.
    x_small = jax.random.normal(k_x1, (2, state_dim), jnp.float32)
    _check(x_small, params, kparams, action_dim)

    # Larger case: exercises the multi-tile "parallel" path + batch padding.
    x_big = jax.random.normal(k_x2, (300, state_dim), jnp.float32)
    _check(x_big, params, kparams, action_dim)

    print("KERNEL_OK")
</pallas_src>

<mosaic_0001>
module attributes {stable_mosaic.version = 11 : i64} {
  func.func @_actor_kernel(%arg0: i32, %arg1: memref<2x32xf32, #tpu.memory_space<vmem>>, %arg2: memref<32x512xbf16, #tpu.memory_space<vmem>>, %arg3: memref<1x512xf32, #tpu.memory_space<vmem>>, %arg4: memref<512x384xbf16, #tpu.memory_space<vmem>>, %arg5: memref<1x384xf32, #tpu.memory_space<vmem>>, %arg6: memref<384x128xbf16, #tpu.memory_space<vmem>>, %arg7: memref<1x4xf32, #tpu.memory_space<vmem>>, %arg8: memref<2x4xf32, #tpu.memory_space<vmem>>, %arg9: memref<2x300xbf16, #tpu.memory_space<vmem>>) attributes {dimension_semantics = [#tpu.dimension_semantics<parallel>], iteration_bounds = array<i64: 1>, scalar_prefetch = 0 : i64, scratch_operands = 0 : i64, tpu.core_type = #tpu.core_type<tc>, window_params = [{transform_indices = @transform_0, window_bounds = array<i64: 2, 32>}, {pipeline_mode = #tpu.pipeline_mode<synchronous>, transform_indices = @transform_1, window_bounds = array<i64: 32, 512>}, {pipeline_mode = #tpu.pipeline_mode<synchronous>, transform_indices = @transform_2, window_bounds = array<i64: 1, 512>}, {pipeline_mode = #tpu.pipeline_mode<synchronous>, transform_indices = @transform_3, window_bounds = array<i64: 512, 384>}, {pipeline_mode = #tpu.pipeline_mode<synchronous>, transform_indices = @transform_4, window_bounds = array<i64: 1, 384>}, {pipeline_mode = #tpu.pipeline_mode<synchronous>, transform_indices = @transform_5, window_bounds = array<i64: 384, 128>}, {pipeline_mode = #tpu.pipeline_mode<synchronous>, transform_indices = @transform_6, window_bounds = array<i64: 1, 4>}, {transform_indices = @transform_7, window_bounds = array<i64: 2, 4>}, {transform_indices = @transform_8, window_bounds = array<i64: 2, 300>}]} {
    %c0 = arith.constant 0 : index
    %c0_0 = arith.constant 0 : index
    %0 = vector.load %arg1[%c0, %c0_0] : memref<2x32xf32, #tpu.memory_space<vmem>>, vector<2x32xf32>
    %1 = arith.truncf %0 : vector<2x32xf32> to vector<2x32xbf16>
    %c0_1 = arith.constant 0 : index
    %c0_2 = arith.constant 0 : index
    %2 = vector.load %arg2[%c0_1, %c0_2] : memref<32x512xbf16, #tpu.memory_space<vmem>>, vector<32x512xbf16>
    %cst = arith.constant dense<0.000000e+00> : vector<2x512xf32>
    %3 = tpu.matmul %1, %2, %cst {dimension_numbers = #tpu.dot_dimension_numbers<[1], [0], [0], [1], [0, 0, 1, 1], [], []>} : vector<2x32xbf16>, vector<32x512xbf16>, vector<2x512xf32> -> vector<2x512xf32>
    %c0_3 = arith.constant 0 : index
    %c0_4 = arith.constant 0 : index
    %4 = vector.load %arg3[%c0_3, %c0_4] : memref<1x512xf32, #tpu.memory_space<vmem>>, vector<1x512xf32>
    %5 = vector.broadcast %4 : vector<1x512xf32> to vector<2x512xf32>
    %6 = arith.addf %3, %5 : vector<2x512xf32>
    %cst_5 = arith.constant 0.000000e+00 : f32
    %7 = vector.broadcast %cst_5 : f32 to vector<2x512xf32>
    %8 = arith.maximumf %6, %7 : vector<2x512xf32>
    %9 = arith.truncf %8 : vector<2x512xf32> to vector<2x512xbf16>
    %c0_6 = arith.constant 0 : index
    %c0_7 = arith.constant 0 : index
    %10 = vector.load %arg4[%c0_6, %c0_7] : memref<512x384xbf16, #tpu.memory_space<vmem>>, vector<512x384xbf16>
    %cst_8 = arith.constant dense<0.000000e+00> : vector<2x384xf32>
    %11 = tpu.matmul %9, %10, %cst_8 {dimension_numbers = #tpu.dot_dimension_numbers<[1], [0], [0], [1], [0, 0, 1, 1], [], []>} : vector<2x512xbf16>, vector<512x384xbf16>, vector<2x384xf32> -> vector<2x384xf32>
    %c0_9 = arith.constant 0 : index
    %c0_10 = arith.constant 0 : index
    %12 = vector.load %arg5[%c0_9, %c0_10] : memref<1x384xf32, #tpu.memory_space<vmem>>, vector<1x384xf32>
    %13 = vector.broadcast %12 : vector<1x384xf32> to vector<2x384xf32>
    %14 = arith.addf %11, %13 : vector<2x384xf32>
    %cst_11 = arith.constant 0.000000e+00 : f32
    %15 = vector.broadcast %cst_11 : f32 to vector<2x384xf32>
    %16 = arith.maximumf %14, %15 : vector<2x384xf32>
    %17 = vector.extract_strided_slice %16 {offsets = [0, 0], sizes = [2, 300], strides = [1, 1]} : vector<2x384xf32> to vector<2x300xf32>
    %18 = arith.truncf %17 : vector<2x300xf32> to vector<2x300xbf16>
    %c0_12 = arith.constant 0 : index
    %c0_13 = arith.constant 0 : index
    %19 = vector.load %arg9[%c0_12, %c0_13] : memref<2x300xbf16, #tpu.memory_space<vmem>>, vector<2x300xbf16>
    tpu.vector_store %arg9[%c0_12, %c0_13], %18 {strides = array<i32>} : memref<2x300xbf16, #tpu.memory_space<vmem>>, vector<2x300xbf16>,
    %20 = arith.truncf %16 : vector<2x384xf32> to vector<2x384xbf16>
    %c0_14 = arith.constant 0 : index
    %c0_15 = arith.constant 0 : index
    %21 = vector.load %arg6[%c0_14, %c0_15] : memref<384x128xbf16, #tpu.memory_space<vmem>>, vector<384x128xbf16>
    %cst_16 = arith.constant dense<0.000000e+00> : vector<2x128xf32>
    %22 = tpu.matmul %20, %21, %cst_16 {dimension_numbers = #tpu.dot_dimension_numbers<[1], [0], [0], [1], [0, 0, 1, 1], [], []>} : vector<2x384xbf16>, vector<384x128xbf16>, vector<2x128xf32> -> vector<2x128xf32>
    %23 = vector.extract_strided_slice %22 {offsets = [0, 0], sizes = [2, 4], strides = [1, 1]} : vector<2x128xf32> to vector<2x4xf32>
    %c0_17 = arith.constant 0 : index
    %c0_18 = arith.constant 0 : index
    %24 = vector.load %arg7[%c0_17, %c0_18] : memref<1x4xf32, #tpu.memory_space<vmem>>, vector<1x4xf32>
    %25 = vector.broadcast %24 : vector<1x4xf32> to vector<2x4xf32>
    %26 = arith.addf %23, %25 : vector<2x4xf32>
    %27 = math.tanh %26 : vector<2x4xf32>
    %c0_19 = arith.constant 0 : index
    %c0_20 = arith.constant 0 : index
    %28 = vector.load %arg8[%c0_19, %c0_20] : memref<2x4xf32, #tpu.memory_space<vmem>>, vector<2x4xf32>
    tpu.vector_store %arg8[%c0_19, %c0_20], %27 {strides = array<i32>} : memref<2x4xf32, #tpu.memory_space<vmem>>, vector<2x4xf32>,
    return
  }
  func.func @transform_0(%arg0: i32) -> (i32, i32) {
    %c0_i32 = arith.constant 0 : i32
    %c0_i32_0 = arith.constant 0 : i32
    return %arg0, %c0_i32 : i32, i32
  }
  func.func @transform_1(%arg0: i32) -> (i32, i32) {
    %c0_i32 = arith.constant 0 : i32
    %c0_i32_0 = arith.constant 0 : i32
    %c0_i32_1 = arith.constant 0 : i32
    return %c0_i32, %c0_i32_0 : i32, i32
  }
  func.func @transform_2(%arg0: i32) -> (i32, i32) {
    %c0_i32 = arith.constant 0 : i32
    %c0_i32_0 = arith.constant 0 : i32
    %c0_i32_1 = arith.constant 0 : i32
    return %c0_i32, %c0_i32_0 : i32, i32
  }
  func.func @transform_3(%arg0: i32) -> (i32, i32) {
    %c0_i32 = arith.constant 0 : i32
    %c0_i32_0 = arith.constant 0 : i32
    %c0_i32_1 = arith.constant 0 : i32
    return %c0_i32, %c0_i32_0 : i32, i32
  }
  func.func @transform_4(%arg0: i32) -> (i32, i32) {
    %c0_i32 = arith.constant 0 : i32
    %c0_i32_0 = arith.constant 0 : i32
    %c0_i32_1 = arith.constant 0 : i32
    return %c0_i32, %c0_i32_0 : i32, i32
  }
  func.func @transform_5(%arg0: i32) -> (i32, i32) {
    %c0_i32 = arith.constant 0 : i32
    %c0_i32_0 = arith.constant 0 : i32
    %c0_i32_1 = arith.constant 0 : i32
    return %c0_i32, %c0_i32_0 : i32, i32
  }
  func.func @transform_6(%arg0: i32) -> (i32, i32) {
    %c0_i32 = arith.constant 0 : i32
    %c0_i32_0 = arith.constant 0 : i32
    %c0_i32_1 = arith.constant 0 : i32
    return %c0_i32, %c0_i32_0 : i32, i32
  }
  func.func @transform_7(%arg0: i32) -> (i32, i32) {
    %c0_i32 = arith.constant 0 : i32
    %c0_i32_0 = arith.constant 0 : i32
    return %arg0, %c0_i32 : i32, i32
  }
  func.func @transform_8(%arg0: i32) -> (i32, i32) {
    %c0_i32 = arith.constant 0 : i32
    %c0_i32_0 = arith.constant 0 : i32
    return %arg0, %c0_i32 : i32, i32
  }
}

</mosaic_0001>

<llo_original>
// kernel: tpu_custom_call.1
$region0: #{tpu_custom_call.1}
  #allocation0 [shape = 'u32[]', space=smem, size = 0x4, offset = 0x4, fixed_abs, tag = 'smem constant byte address 0x4 - core index']
  #allocation1 [shape = 'u32[144,128]{1,0:T(1,128)}', space=vmem, size = 0x12000, scoped, tag = 'internal scratch']
  %s0 = inlined_call_operand.hbm [shape: f32[2,32], index: 0, kind: input, shape index: {}]
  %s1 = inlined_call_operand.hbm [shape: bf16[32,512], index: 1, kind: input, shape index: {}]
  %s2 = inlined_call_operand.hbm [shape: f32[1,512], index: 2, kind: input, shape index: {}]
  %s3 = inlined_call_operand.hbm [shape: bf16[512,384], index: 3, kind: input, shape index: {}]
  %s4 = inlined_call_operand.vmem [shape: f32[1,384], index: 4, kind: input, shape index: {}]
  %s5 = inlined_call_operand.hbm [shape: bf16[384,128], index: 5, kind: input, shape index: {}]
  %s6 = inlined_call_operand.vmem [shape: f32[1,4], index: 6, kind: input, shape index: {}]
  %s7 = inlined_call_operand.hbm [shape: f32[2,4], index: 7, kind: output, shape index: {0}]
  %s8 = inlined_call_operand.hbm [shape: bf16[2,300], index: 8, kind: output, shape index: {1}]
  %9 = xla_tuple %s7, %s8
  %s10 = sld [smem:[#allocation0]]
  $region66: #{tpu_custom_call.1} parent=0
    _
  %s12 = ssub.s32 1, %s10
  %s13 = scalar_select 0, %s12, %s10
  $region1: #{tpu_custom_call.1} parent=0
    #allocation2 [shape = 'u8[1024]{0}', space=vmem, size = 0x400, scoped, tag = 'input window, operand 0, single buffered']
    #allocation3 [shape = 's32[1]{0}', space=sflag, size = 0x4, scoped, tag = 'scoped memory for tpu_custom_call.1']
    #allocation4 [shape = 's32[1]{0}', space=sflag, size = 0x4, scoped, tag = 'scoped memory for tpu_custom_call.1']
    #allocation5 [shape = 'u8[32768]{0}', space=vmem, size = 0x8000, scoped, tag = 'input window, operand 1, single buffered']
    #allocation6 [shape = 's32[1]{0}', space=sflag, size = 0x4, scoped, tag = 'scoped memory for tpu_custom_call.1']
    #allocation7 [shape = 'u8[2048]{0}', space=vmem, size = 0x800, scoped, tag = 'input window, operand 2, single buffered']
    #allocation8 [shape = 'u8[393216]{0}', space=vmem, size = 0x60000, scoped, tag = 'input window, operand 3, single buffered']
    #allocation9 [shape = 's32[1]{0}', space=sflag, size = 0x4, scoped, tag = 'scoped memory for tpu_custom_call.1']
    #allocation10 [shape = 'u8[98304]{0}', space=vmem, size = 0x18000, scoped, tag = 'input window, operand 5, single buffered']
    #allocation11 [shape = 'u8[1024]{0}', space=vmem, size = 0x400, scoped, tag = 'output window, operand 0, single buffered']
    #allocation12 [shape = 'u8[1536]{0}', space=vmem, size = 0x800, scoped, tag = 'output window, operand 1, single buffered']
    #allocation13 [shape = 's32[1]{0}', space=sflag, size = 0x4, scoped, tag = 'scoped memory for tpu_custom_call.1']
    %14 = vsyncpa [#allocation3], 0
    %15 = vsyncpa [#allocation6], 0
    %16 = vsyncpa [#allocation9], 0
    %17 = vsyncpa [#allocation4], 0
    %18 = vsyncpa [#allocation13], 0
    // Predicated region
    $region2: #{tpu_custom_call.1} parent=1 // pred_check
      _
    $region3: #{tpu_custom_call.1} parent=1 // pred_check_branch
      %20 = sbr.rel (0) target = $region5
    $region4: #{tpu_custom_call.1} parent=1 // pred_region
      %s22 = ssub.s32 32, 32
      %23 = vsyncadd [#allocation3], %s22
      %s25 = sshll.u32 [#allocation2], 4
      %s26 = int_to_ptr.vmem [resolvable:$true] %s25
      %28 = dma.hbm_to_vmem [thread:$0]  %s0, 32, %s26, [#allocation3]
    $region5: #{tpu_custom_call.1} parent=1 // pred_fallthru
      _
    // Predicated region
    $region6: #{tpu_custom_call.1} parent=1 // pred_check
      _
    $region7: #{tpu_custom_call.1} parent=1 // pred_check_branch
      %30 = sbr.rel (0) target = $region9
    $region8: #{tpu_custom_call.1} parent=1 // pred_region
      %s32 = ssub.s32 1024, 1024
      %33 = vsyncadd [#allocation6], %s32
      %s34 = sshll.u32 [#allocation5], 4
      %s35 = int_to_ptr.vmem [resolvable:$true] %s34
      %40 = dma.hbm_to_vmem [thread:$0]  %s1, 1024, %s35, [#allocation6], 256, 256, 16
    $region9: #{tpu_custom_call.1} parent=1 // pred_fallthru
      _
    // Predicated region
    $region10: #{tpu_custom_call.1} parent=1 // pred_check
      _
    $region11: #{tpu_custom_call.1} parent=1 // pred_check_branch
      %42 = sbr.rel (0) target = $region13
    $region12: #{tpu_custom_call.1} parent=1 // pred_region
      %s44 = ssub.s32 64, 64
      %45 = vsyncadd [#allocation6], %s44
      %s47 = sshll.u32 [#allocation7], 4
      %s48 = int_to_ptr.vmem [resolvable:$true] %s47
      %50 = dma.hbm_to_vmem [thread:$0]  %s2, 64, %s48, [#allocation6]
    $region13: #{tpu_custom_call.1} parent=1 // pred_fallthru
      _
    // Predicated region
    $region14: #{tpu_custom_call.1} parent=1 // pred_check
      _
    $region15: #{tpu_custom_call.1} parent=1 // pred_check_branch
      %52 = sbr.rel (0) target = $region17
    $region16: #{tpu_custom_call.1} parent=1 // pred_region
      %s54 = ssub.s32 12288, 12288
      %55 = vsyncadd [#allocation9], %s54
      %s56 = sshll.u32 [#allocation8], 4
      %s57 = int_to_ptr.vmem [resolvable:$true] %s56
      %62 = dma.hbm_to_vmem [thread:$0]  %s3, 12288, %s57, [#allocation9], 192, 192, 12
    $region17: #{tpu_custom_call.1} parent=1 // pred_fallthru
      _
    // Predicated region
    $region18: #{tpu_custom_call.1} parent=1 // pred_check
      _
    $region19: #{tpu_custom_call.1} parent=1 // pred_check_branch
      %64 = sbr.rel (0) target = $region21
    $region20: #{tpu_custom_call.1} parent=1 // pred_region
      _
    $region21: #{tpu_custom_call.1} parent=1 // pred_fallthru
      _
    // Predicated region
    $region22: #{tpu_custom_call.1} parent=1 // pred_check
      _
    $region23: #{tpu_custom_call.1} parent=1 // pred_check_branch
      %66 = sbr.rel (0) target = $region25
    $region24: #{tpu_custom_call.1} parent=1 // pred_region
      %s68 = ssub.s32 3072, 3072
      %69 = vsyncadd [#allocation9], %s68
      %s70 = sshll.u32 [#allocation10], 4
      %s71 = int_to_ptr.vmem [resolvable:$true] %s70
      %76 = dma.hbm_to_vmem [thread:$0]  %s5, 3072, %s71, [#allocation9], 64, 64, 4
    $region25: #{tpu_custom_call.1} parent=1 // pred_fallthru
      _
    // Predicated region
    $region26: #{tpu_custom_call.1} parent=1 // pred_check
      _
    $region27: #{tpu_custom_call.1} parent=1 // pred_check_branch
      %78 = sbr.rel (0) target = $region29
    $region28: #{tpu_custom_call.1} parent=1 // pred_region
      _
    $region29: #{tpu_custom_call.1} parent=1 // pred_fallthru
      _
    // Predicated region
    $region30: #{tpu_custom_call.1} parent=1 // pred_check
      _
    $region31: #{tpu_custom_call.1} parent=1 // pred_check_branch
      %80 = sbr.rel (0) target = $region33
    $region32: #{tpu_custom_call.1} parent=1 // pred_region
      %81 = dma.done [#allocation3], 32
    $region33: #{tpu_custom_call.1} parent=1 // pred_fallthru
      _
    // Predicated region
    $region34: #{tpu_custom_call.1} parent=1 // pred_check
      _
    $region35: #{tpu_custom_call.1} parent=1 // pred_check_branch
      %83 = sbr.rel (0) target = $region37
    $region36: #{tpu_custom_call.1} parent=1 // pred_region
      %84 = dma.done [#allocation6], 1024
    $region37: #{tpu_custom_call.1} parent=1 // pred_fallthru
      _
    // Predicated region
    $region38: #{tpu_custom_call.1} parent=1 // pred_check
      _
    $region39: #{tpu_custom_call.1} parent=1 // pred_check_branch
      %86 = sbr.rel (0) target = $region41
    $region40: #{tpu_custom_call.1} parent=1 // pred_region
      %87 = dma.done [#allocation6], 64
    $region41: #{tpu_custom_call.1} parent=1 // pred_fallthru
      _
    // Predicated region
    $region42: #{tpu_custom_call.1} parent=1 // pred_check
      _
    $region43: #{tpu_custom_call.1} parent=1 // pred_check_branch
      %89 = sbr.rel (0) target = $region45
    $region44: #{tpu_custom_call.1} parent=1 // pred_region
      %90 = dma.done [#allocation9], 12288
    $region45: #{tpu_custom_call.1} parent=1 // pred_fallthru
      _
    // Predicated region
    $region46: #{tpu_custom_call.1} parent=1 // pred_check
      _
    $region47: #{tpu_custom_call.1} parent=1 // pred_check_branch
      %92 = sbr.rel (0) target = $region49
    $region48: #{tpu_custom_call.1} parent=1 // pred_region
      %93 = dma.done [#allocation9], 3072
    $region49: #{tpu_custom_call.1} parent=1 // pred_fallthru
      _
    %v95 = vld [vmem:[#allocation2] sm:$0x3]
    %v96 = vpack.c.bf16 %v95, %v95
    %v97 = vld [vmem:[#allocation5] sm:$0xff]
    %v98 = vld [vmem:[#allocation5 + $0x8] sm:$0xff]
    %v99 = vld [vmem:[#allocation5 + $0x10] sm:$0xff]
    %v100 = vld [vmem:[#allocation5 + $0x18] sm:$0xff]
    %v101 = vld [vmem:[#allocation5 + $0x20] sm:$0xff]
    %v102 = vld [vmem:[#allocation5 + $0x28] sm:$0xff]
    %v103 = vld [vmem:[#allocation5 + $0x30] sm:$0xff]
    %v104 = vld [vmem:[#allocation5 + $0x38] sm:$0xff]
    %v105 = vld [vmem:[#allocation7] sm:$0xf]
    %v107 = vlaneseq
    %v108 = vshrl.u32 %v107, 7
    %v109 = vsub.s32 0, %v108
    %v110 = vrot.slane %v105, %v109
    %v111 = vlaneseq
    %v112 = vshrl.u32 %v111, 7
    %v113 = vsub.s32 1, %v112
    %v114 = vrot.slane %v105, %v113
    %v115 = vlaneseq
    %v116 = vshrl.u32 %v115, 7
    %v117 = vsub.s32 2, %v116
    %v118 = vrot.slane %v105, %v117
    %v119 = vlaneseq
    %v120 = vshrl.u32 %v119, 7
    %v121 = vsub.s32 3, %v120
    %v122 = vrot.slane %v105, %v121
    %v135 = vunpack.c.l.b16 %v97
    %v136 = vunpack.c.h.b16 %v97
    %v137 = vunpack.c.l.b16 %v98
    %v138 = vunpack.c.h.b16 %v98
    %v139 = vunpack.c.l.b16 %v99
    %v140 = vunpack.c.h.b16 %v99
    %v141 = vunpack.c.l.b16 %v100
    %v142 = vunpack.c.h.b16 %v100
    %v143 = vunpack.c.l.b16 %v101
    %v144 = vunpack.c.h.b16 %v101
    %v145 = vunpack.c.l.b16 %v102
    %v146 = vunpack.c.h.b16 %v102
    %v147 = vunpack.c.l.b16 %v103
    %v148 = vunpack.c.h.b16 %v103
    %v149 = vunpack.c.l.b16 %v104
    %v150 = vunpack.c.h.b16 %v104
    %v151 = vpack.c.b16 %v139, %v135
    %v152 = vpack.c.b16 %v140, %v136
    %v153 = vpack.c.b16 %v141, %v137
    %v154 = vpack.c.b16 %v142, %v138
    %v155 = vpack.c.b16 %v147, %v143
    %v156 = vpack.c.b16 %v148, %v144
    %v157 = vpack.c.b16 %v149, %v145
    %v158 = vpack.c.b16 %v150, %v146
    %vm167 = vcmask 261120
    %v169 = vsel %vm167, %v96, 0
    %171 = vmatprep.subr.bf16.mxu0 0
    %172 = vmatpush1.bf16.msra.mxu0 0
    %173 = vmatprep.subr.bf16.mxu0 0
    %174 = vmatpush1.bf16.msra.mxu0 0
    %175 = vmatprep.subr.bf16.mxu0 0
    %176 = vmatpush1.bf16.msra.mxu0 0
    %177 = vmatprep.subr.bf16.mxu0 0
    %178 = vmatpush1.bf16.msra.mxu0 0
    %179 = vmatprep.subr.bf16.mxu0 0
    %180 = vmatpush1.bf16.msra.mxu0 0
    %181 = vmatprep.subr.bf16.mxu0 0
    %182 = vmatpush1.bf16.msra.mxu0 0
    %183 = vmatprep.subr.bf16.mxu0 %v156
    %184 = vmatpush1.bf16.msra.mxu0 %v155
    %185 = vmatprep.subr.bf16.mxu0 %v152
    %186 = vmatpush1.bf16.msra.mxu0 %v151
    %187 = vmatprep.subr.bf16.mxu0 0
    %188 = vmatpush2.bf16.msra.mxu0 0
    %189 = vmatprep.subr.bf16.mxu0 0
    %190 = vmatpush2.bf16.msra.mxu0 0
    %191 = vmatprep.subr.bf16.mxu0 0
    %192 = vmatpush2.bf16.msra.mxu0 0
    %193 = vmatprep.subr.bf16.mxu0 0
    %194 = vmatpush2.bf16.msra.mxu0 0
    %195 = vmatprep.subr.bf16.mxu0 0
    %196 = vmatpush2.bf16.msra.mxu0 0
    %197 = vmatprep.subr.bf16.mxu0 0
    %198 = vmatpush2.bf16.msra.mxu0 0
    %199 = vmatprep.subr.bf16.mxu0 0
    %200 = vmatpush2.bf16.msra.mxu0 0
    %201 = vmatprep.subr.bf16.mxu0 0
    %202 = vmatpush2.bf16.msra.mxu0 0
    %203 = vmatprep.mubr.bf16.mxu0 0
    %204 = vmatmul.mubr.bf16.gmra.mxu0 %v169
    %v205 = vpop.f32.mrf.mxu0
    %v206 = vadd.f32 %v110, %v205
    %v207 = vpop.f32.mrf.mxu0
    %v208 = vadd.f32 %v114, %v207
    %v209 = vpop.f32.mrf.mxu0
    %v210 = vpop.f32.mrf.mxu0
    %211 = vdwg.mxu0
    %212 = vmatprep.subr.bf16.mxu0 0
    %213 = vmatpush1.bf16.msra.mxu0 0
    %214 = vmatprep.subr.bf16.mxu0 0
    %215 = vmatpush1.bf16.msra.mxu0 0
    %216 = vmatprep.subr.bf16.mxu0 0
    %217 = vmatpush1.bf16.msra.mxu0 0
    %218 = vmatprep.subr.bf16.mxu0 0
    %219 = vmatpush1.bf16.msra.mxu0 0
    %220 = vmatprep.subr.bf16.mxu0 0
    %221 = vmatpush1.bf16.msra.mxu0 0
    %222 = vmatprep.subr.bf16.mxu0 0
    %223 = vmatpush1.bf16.msra.mxu0 0
    %224 = vmatprep.subr.bf16.mxu0 %v158
    %225 = vmatpush1.bf16.msra.mxu0 %v157
    %226 = vmatprep.subr.bf16.mxu0 %v154
    %227 = vmatpush1.bf16.msra.mxu0 %v153
    %228 = vmatprep.subr.bf16.mxu0 0
    %229 = vmatpush2.bf16.msra.mxu0 0
    %230 = vmatprep.subr.bf16.mxu0 0
    %231 = vmatpush2.bf16.msra.mxu0 0
    %232 = vmatprep.subr.bf16.mxu0 0
    %233 = vmatpush2.bf16.msra.mxu0 0
    %234 = vmatprep.subr.bf16.mxu0 0
    %235 = vmatpush2.bf16.msra.mxu0 0
    %236 = vmatprep.subr.bf16.mxu0 0
    %237 = vmatpush2.bf16.msra.mxu0 0
    %238 = vmatprep.subr.bf16.mxu0 0
    %239 = vmatpush2.bf16.msra.mxu0 0
    %240 = vmatprep.subr.bf16.mxu0 0
    %241 = vmatpush2.bf16.msra.mxu0 0
    %242 = vmatprep.subr.bf16.mxu0 0
    %243 = vmatpush2.bf16.msra.mxu0 0
    %244 = vmatprep.mubr.bf16.mxu0 0
    %245 = vmatmul.mubr.bf16.gmra.mxu0 %v169
    %v246 = vpop.f32.mrf.mxu0
    %v247 = vadd.f32 %v118, %v246
    %v248 = vpop.f32.mrf.mxu0
    %v249 = vadd.f32 %v122, %v248
    %v250 = vpop.f32.mrf.mxu0
    %v251 = vpop.f32.mrf.mxu0
    %252 = vdwg.mxu0
    %v253 = vmax.f32 %v206, 0.0
    %v254 = vmax.f32 %v208, 0.0
    %v255 = vmax.f32 %v247, 0.0
    %v256 = vmax.f32 %v249, 0.0
    %v257 = vpack.c.bf16 %v253, %v253
    %v258 = vpack.c.bf16 %v254, %v254
    %v259 = vpack.c.bf16 %v255, %v255
    %v260 = vpack.c.bf16 %v256, %v256
    %v261 = vld [vmem:[#allocation8] sm:$0xff]
    %v262 = vld [vmem:[#allocation8 + $0x8] sm:$0xf]
    %v263 = vld [vmem:[#allocation8 + $0xc] sm:$0xff]
    %v264 = vld [vmem:[#allocation8 + $0x14] sm:$0xf]
    %v265 = vld [vmem:[#allocation8 + $0x18] sm:$0xff]
    %v266 = vld [vmem:[#allocation8 + $0x20] sm:$0xf]
    %v267 = vld [vmem:[#allocation8 + $0x24] sm:$0xff]
    %v268 = vld [vmem:[#allocation8 + $0x2c] sm:$0xf]
    %v269 = vld [vmem:[#allocation8 + $0x30] sm:$0xff]
    %v270 = vld [vmem:[#allocation8 + $0x38] sm:$0xf]
    %v271 = vld [vmem:[#allocation8 + $0x3c] sm:$0xff]
    %v272 = vld [vmem:[#allocation8 + $0x44] sm:$0xf]
    %v273 = vld [vmem:[#allocation8 + $0x48] sm:$0xff]
    %v274 = vld [vmem:[#allocation8 + $0x50] sm:$0xf]
    %v275 = vld [vmem:[#allocation8 + $0x54] sm:$0xff]
    %v276 = vld [vmem:[#allocation8 + $0x5c] sm:$0xf]
    %v277 = vld [vmem:[#allocation8 + $0x60] sm:$0xff]
    %v278 = vld [vmem:[#allocation8 + $0x68] sm:$0xf]
    %v279 = vld [vmem:[#allocation8 + $0x6c] sm:$0xff]
    %v280 = vld [vmem:[#allocation8 + $0x74] sm:$0xf]
    %v281 = vld [vmem:[#allocation8 + $0x78] sm:$0xff]
    %v282 = vld [vmem:[#allocation8 + $0x80] sm:$0xf]
    %v283 = vld [vmem:[#allocation8 + $0x84] sm:$0xff]
    %v284 = vld [vmem:[#allocation8 + $0x8c] sm:$0xf]
    %v285 = vld [vmem:[#allocation8 + $0x90] sm:$0xff]
    %v286 = vld [vmem:[#allocation8 + $0x98] sm:$0xf]
    %v287 = vld [vmem:[#allocation8 + $0x9c] sm:$0xff]
    %v288 = vld [vmem:[#allocation8 + $0xa4] sm:$0xf]
    %v289 = vld [vmem:[#allocation8 + $0xa8] sm:$0xff]
    %v290 = vld [vmem:[#allocation8 + $0xb0] sm:$0xf]
    %v291 = vld [vmem:[#allocation8 + $0xb4] sm:$0xff]
    %v292 = vld [vmem:[#allocation8 + $0xbc] sm:$0xf]
    %v293 = vld [vmem:[#allocation8 + $0xc0] sm:$0xff]
    %v294 = vld [vmem:[#allocation8 + $0xc8] sm:$0xf]
    %v295 = vld [vmem:[#allocation8 + $0xcc] sm:$0xff]
    %v296 = vld [vmem:[#allocation8 + $0xd4] sm:$0xf]
    %v297 = vld [vmem:[#allocation8 + $0xd8] sm:$0xff]
    %v298 = vld [vmem:[#allocation8 + $0xe0] sm:$0xf]
    %v299 = vld [vmem:[#allocation8 + $0xe4] sm:$0xff]
    %v300 = vld [vmem:[#allocation8 + $0xec] sm:$0xf]
    %v301 = vld [vmem:[#allocation8 + $0xf0] sm:$0xff]
    %v302 = vld [vmem:[#allocation8 + $0xf8] sm:$0xf]
    %v303 = vld [vmem:[#allocation8 + $0xfc] sm:$0xff]
    %v304 = vld [vmem:[#allocation8 + $0x104] sm:$0xf]
    %v305 = vld [vmem:[#allocation8 + $0x108] sm:$0xff]
    %v306 = vld [vmem:[#allocation8 + $0x110] sm:$0xf]
    %v307 = vld [vmem:[#allocation8 + $0x114] sm:$0xff]
    %v308 = vld [vmem:[#allocation8 + $0x11c] sm:$0xf]
    %v309 = vld [vmem:[#allocation8 + $0x120] sm:$0xff]
    %v310 = vld [vmem:[#allocation8 + $0x128] sm:$0xf]
    %v311 = vld [vmem:[#allocation8 + $0x12c] sm:$0xff]
    %v312 = vld [vmem:[#allocation8 + $0x134] sm:$0xf]
    %v313 = vld [vmem:[#allocation8 + $0x138] sm:$0xff]
    %v314 = vld [vmem:[#allocation8 + $0x140] sm:$0xf]
    %v315 = vld [vmem:[#allocation8 + $0x144] sm:$0xff]
    %v316 = vld [vmem:[#allocation8 + $0x14c] sm:$0xf]
    %v317 = vld [vmem:[#allocation8 + $0x150] sm:$0xff]
    %v318 = vld [vmem:[#allocation8 + $0x158] sm:$0xf]
    %v319 = vld [vmem:[#allocation8 + $0x15c] sm:$0xff]
    %v320 = vld [vmem:[#allocation8 + $0x164] sm:$0xf]
    %v321 = vld [vmem:[#allocation8 + $0x168] sm:$0xff]
    %v322 = vld [vmem:[#allocation8 + $0x170] sm:$0xf]
    %v323 = vld [vmem:[#allocation8 + $0x174] sm:$0xff]
    %v324 = vld [vmem:[#allocation8 + $0x17c] sm:$0xf]
    %v325 = vld [vmem:[#allocation8 + $0x180] sm:$0xff]
    %v326 = vld [vmem:[#allocation8 + $0x188] sm:$0xf]
    %v327 = vld [vmem:[#allocation8 + $0x18c] sm:$0xff]
    %v328 = vld [vmem:[#allocation8 + $0x194] sm:$0xf]
    %v329 = vld [vmem:[#allocation8 + $0x198] sm:$0xff]
    %v330 = vld [vmem:[#allocation8 + $0x1a0] sm:$0xf]
    %v331 = vld [vmem:[#allocation8 + $0x1a4] sm:$0xff]
    %v332 = vld [vmem:[#allocation8 + $0x1ac] sm:$0xf]
    %v333 = vld [vmem:[#allocation8 + $0x1b0] sm:$0xff]
    %v334 = vld [vmem:[#allocation8 + $0x1b8] sm:$0xf]
    %v335 = vld [vmem:[#allocation8 + $0x1bc] sm:$0xff]
    %v336 = vld [vmem:[#allocation8 + $0x1c4] sm:$0xf]
    %v337 = vld [vmem:[#allocation8 + $0x1c8] sm:$0xff]
    %v338 = vld [vmem:[#allocation8 + $0x1d0] sm:$0xf]
    %v339 = vld [vmem:[#allocation8 + $0x1d4] sm:$0xff]
    %v340 = vld [vmem:[#allocation8 + $0x1dc] sm:$0xf]
    %v341 = vld [vmem:[#allocation8 + $0x1e0] sm:$0xff]
    %v342 = vld [vmem:[#allocation8 + $0x1e8] sm:$0xf]
    %v343 = vld [vmem:[#allocation8 + $0x1ec] sm:$0xff]
    %v344 = vld [vmem:[#allocation8 + $0x1f4] sm:$0xf]
    %v345 = vld [vmem:[#allocation8 + $0x1f8] sm:$0xff]
    %v346 = vld [vmem:[#allocation8 + $0x200] sm:$0xf]
    %v347 = vld [vmem:[#allocation8 + $0x204] sm:$0xff]
    %v348 = vld [vmem:[#allocation8 + $0x20c] sm:$0xf]
    %v349 = vld [vmem:[#allocation8 + $0x210] sm:$0xff]
    %v350 = vld [vmem:[#allocation8 + $0x218] sm:$0xf]
    %v351 = vld [vmem:[#allocation8 + $0x21c] sm:$0xff]
    %v352 = vld [vmem:[#allocation8 + $0x224] sm:$0xf]
    %v353 = vld [vmem:[#allocation8 + $0x228] sm:$0xff]
    %v354 = vld [vmem:[#allocation8 + $0x230] sm:$0xf]
    %v355 = vld [vmem:[#allocation8 + $0x234] sm:$0xff]
    %v356 = vld [vmem:[#allocation8 + $0x23c] sm:$0xf]
    %v357 = vld [vmem:[#allocation8 + $0x240] sm:$0xff]
    %v358 = vld [vmem:[#allocation8 + $0x248] sm:$0xf]
    %v359 = vld [vmem:[#allocation8 + $0x24c] sm:$0xff]
    %v360 = vld [vmem:[#allocation8 + $0x254] sm:$0xf]
    %v361 = vld [vmem:[#allocation8 + $0x258] sm:$0xff]
    %v362 = vld [vmem:[#allocation8 + $0x260] sm:$0xf]
    %v363 = vld [vmem:[#allocation8 + $0x264] sm:$0xff]
    %v364 = vld [vmem:[#allocation8 + $0x26c] sm:$0xf]
    %v365 = vld [vmem:[#allocation8 + $0x270] sm:$0xff]
    %v366 = vld [vmem:[#allocation8 + $0x278] sm:$0xf]
    %v367 = vld [vmem:[#allocation8 + $0x27c] sm:$0xff]
    %v368 = vld [vmem:[#allocation8 + $0x284] sm:$0xf]
    %v369 = vld [vmem:[#allocation8 + $0x288] sm:$0xff]
    %v370 = vld [vmem:[#allocation8 + $0x290] sm:$0xf]
    %v371 = vld [vmem:[#allocation8 + $0x294] sm:$0xff]
    %v372 = vld [vmem:[#allocation8 + $0x29c] sm:$0xf]
    %v373 = vld [vmem:[#allocation8 + $0x2a0] sm:$0xff]
    %v374 = vld [vmem:[#allocation8 + $0x2a8] sm:$0xf]
    %v375 = vld [vmem:[#allocation8 + $0x2ac] sm:$0xff]
    %v376 = vld [vmem:[#allocation8 + $0x2b4] sm:$0xf]
    %v377 = vld [vmem:[#allocation8 + $0x2b8] sm:$0xff]
    %v378 = vld [vmem:[#allocation8 + $0x2c0] sm:$0xf]
    %v379 = vld [vmem:[#allocation8 + $0x2c4] sm:$0xff]
    %v380 = vld [vmem:[#allocation8 + $0x2cc] sm:$0xf]
    %v381 = vld [vmem:[#allocation8 + $0x2d0] sm:$0xff]
    %v382 = vld [vmem:[#allocation8 + $0x2d8] sm:$0xf]
    %v383 = vld [vmem:[#allocation8 + $0x2dc] sm:$0xff]
    %v384 = vld [vmem:[#allocation8 + $0x2e4] sm:$0xf]
    %v385 = vld [vmem:[#allocation8 + $0x2e8] sm:$0xff]
    %v386 = vld [vmem:[#allocation8 + $0x2f0] sm:$0xf]
    %v387 = vld [vmem:[#allocation8 + $0x2f4] sm:$0xff]
    %v388 = vld [vmem:[#allocation8 + $0x2fc] sm:$0xf]
    %v389 = vld [vmem:[%s4] sm:$0x7]
    %v391 = vlaneseq
    %v392 = vshrl.u32 %v391, 7
    %v393 = vsub.s32 0, %v392
    %v394 = vrot.slane %v389, %v393
    %v395 = vlaneseq
    %v396 = vshrl.u32 %v395, 7
    %v397 = vsub.s32 1, %v396
    %v398 = vrot.slane %v389, %v397
    %v399 = vlaneseq
    %v400 = vshrl.u32 %v399, 7
    %v401 = vsub.s32 2, %v400
    %v402 = vrot.slane %v389, %v401
    %v534 = vunpack.c.l.b16 %v261
    %v535 = vunpack.c.h.b16 %v261
    %v536 = vunpack.c.l.b16 %v262
    %v537 = vunpack.c.l.b16 %v263
    %v538 = vunpack.c.h.b16 %v263
    %v539 = vunpack.c.l.b16 %v264
    %v540 = vunpack.c.l.b16 %v265
    %v541 = vunpack.c.h.b16 %v265
    %v542 = vunpack.c.l.b16 %v266
    %v543 = vunpack.c.l.b16 %v267
    %v544 = vunpack.c.h.b16 %v267
    %v545 = vunpack.c.l.b16 %v268
    %v546 = vunpack.c.l.b16 %v269
    %v547 = vunpack.c.h.b16 %v269
    %v548 = vunpack.c.l.b16 %v270
    %v549 = vunpack.c.l.b16 %v271
    %v550 = vunpack.c.h.b16 %v271
    %v551 = vunpack.c.l.b16 %v272
    %v552 = vunpack.c.l.b16 %v273
    %v553 = vunpack.c.h.b16 %v273
    %v554 = vunpack.c.l.b16 %v274
    %v555 = vunpack.c.l.b16 %v275
    %v556 = vunpack.c.h.b16 %v275
    %v557 = vunpack.c.l.b16 %v276
    %v558 = vunpack.c.l.b16 %v277
    %v559 = vunpack.c.h.b16 %v277
    %v560 = vunpack.c.l.b16 %v278
    %v561 = vunpack.c.l.b16 %v279
    %v562 = vunpack.c.h.b16 %v279
    %v563 = vunpack.c.l.b16 %v280
    %v564 = vunpack.c.l.b16 %v281
    %v565 = vunpack.c.h.b16 %v281
    %v566 = vunpack.c.l.b16 %v282
    %v567 = vunpack.c.l.b16 %v283
    %v568 = vunpack.c.h.b16 %v283
    %v569 = vunpack.c.l.b16 %v284
    %v570 = vunpack.c.l.b16 %v285
    %v571 = vunpack.c.h.b16 %v285
    %v572 = vunpack.c.l.b16 %v286
    %v573 = vunpack.c.l.b16 %v287
    %v574 = vunpack.c.h.b16 %v287
    %v575 = vunpack.c.l.b16 %v288
    %v576 = vunpack.c.l.b16 %v289
    %v577 = vunpack.c.h.b16 %v289
    %v578 = vunpack.c.l.b16 %v290
    %v579 = vunpack.c.l.b16 %v291
    %v580 = vunpack.c.h.b16 %v291
    %v581 = vunpack.c.l.b16 %v292
    %v582 = vunpack.c.l.b16 %v293
    %v583 = vunpack.c.h.b16 %v293
    %v584 = vunpack.c.l.b16 %v294
    %v585 = vunpack.c.l.b16 %v295
    %v586 = vunpack.c.h.b16 %v295
    %v587 = vunpack.c.l.b16 %v296
    %v588 = vunpack.c.l.b16 %v297
    %v589 = vunpack.c.h.b16 %v297
    %v590 = vunpack.c.l.b16 %v298
    %v591 = vunpack.c.l.b16 %v299
    %v592 = vunpack.c.h.b16 %v299
    %v593 = vunpack.c.l.b16 %v300
    %v594 = vunpack.c.l.b16 %v301
    %v595 = vunpack.c.h.b16 %v301
    %v596 = vunpack.c.l.b16 %v302
    %v597 = vunpack.c.l.b16 %v303
    %v598 = vunpack.c.h.b16 %v303
    %v599 = vunpack.c.l.b16 %v304
    %v600 = vunpack.c.l.b16 %v305
    %v601 = vunpack.c.h.b16 %v305
    %v602 = vunpack.c.l.b16 %v306
    %v603 = vunpack.c.l.b16 %v307
    %v604 = vunpack.c.h.b16 %v307
    %v605 = vunpack.c.l.b16 %v308
    %v606 = vunpack.c.l.b16 %v309
    %v607 = vunpack.c.h.b16 %v309
    %v608 = vunpack.c.l.b16 %v310
    %v609 = vunpack.c.l.b16 %v311
    %v610 = vunpack.c.h.b16 %v311
    %v611 = vunpack.c.l.b16 %v312
    %v612 = vunpack.c.l.b16 %v313
    %v613 = vunpack.c.h.b16 %v313
    %v614 = vunpack.c.l.b16 %v314
    %v615 = vunpack.c.l.b16 %v315
    %v616 = vunpack.c.h.b16 %v315
    %v617 = vunpack.c.l.b16 %v316
    %v618 = vunpack.c.l.b16 %v317
    %v619 = vunpack.c.h.b16 %v317
    %v620 = vunpack.c.l.b16 %v318
    %v621 = vunpack.c.l.b16 %v319
    %v622 = vunpack.c.h.b16 %v319
    %v623 = vunpack.c.l.b16 %v320
    %v624 = vunpack.c.l.b16 %v321
    %v625 = vunpack.c.h.b16 %v321
    %v626 = vunpack.c.l.b16 %v322
    %v627 = vunpack.c.l.b16 %v323
    %v628 = vunpack.c.h.b16 %v323
    %v629 = vunpack.c.l.b16 %v324
    %v630 = vunpack.c.l.b16 %v325
    %v631 = vunpack.c.h.b16 %v325
    %v632 = vunpack.c.l.b16 %v326
    %v633 = vunpack.c.l.b16 %v327
    %v634 = vunpack.c.h.b16 %v327
    %v635 = vunpack.c.l.b16 %v328
    %v636 = vunpack.c.l.b16 %v329
    %v637 = vunpack.c.h.b16 %v329
    %v638 = vunpack.c.l.b16 %v330
    %v639 = vunpack.c.l.b16 %v331
    %v640 = vunpack.c.h.b16 %v331
    %v641 = vunpack.c.l.b16 %v332
    %v642 = vunpack.c.l.b16 %v333
    %v643 = vunpack.c.h.b16 %v333
    %v644 = vunpack.c.l.b16 %v334
    %v645 = vunpack.c.l.b16 %v335
    %v646 = vunpack.c.h.b16 %v335
    %v647 = vunpack.c.l.b16 %v336
    %v648 = vunpack.c.l.b16 %v337
    %v649 = vunpack.c.h.b16 %v337
    %v650 = vunpack.c.l.b16 %v338
    %v651 = vunpack.c.l.b16 %v339
    %v652 = vunpack.c.h.b16 %v339
    %v653 = vunpack.c.l.b16 %v340
    %v654 = vunpack.c.l.b16 %v341
    %v655 = vunpack.c.h.b16 %v341
    %v656 = vunpack.c.l.b16 %v342
    %v657 = vunpack.c.l.b16 %v343
    %v658 = vunpack.c.h.b16 %v343
    %v659 = vunpack.c.l.b16 %v344
    %v660 = vunpack.c.l.b16 %v345
    %v661 = vunpack.c.h.b16 %v345
    %v662 = vunpack.c.l.b16 %v346
    %v663 = vunpack.c.l.b16 %v347
    %v664 = vunpack.c.h.b16 %v347
    %v665 = vunpack.c.l.b16 %v348
    %v666 = vunpack.c.l.b16 %v349
    %v667 = vunpack.c.h.b16 %v349
    %v668 = vunpack.c.l.b16 %v350
    %v669 = vunpack.c.l.b16 %v351
    %v670 = vunpack.c.h.b16 %v351
    %v671 = vunpack.c.l.b16 %v352
    %v672 = vunpack.c.l.b16 %v353
    %v673 = vunpack.c.h.b16 %v353
    %v674 = vunpack.c.l.b16 %v354
    %v675 = vunpack.c.l.b16 %v355
    %v676 = vunpack.c.h.b16 %v355
    %v677 = vunpack.c.l.b16 %v356
    %v678 = vunpack.c.l.b16 %v357
    %v679 = vunpack.c.h.b16 %v357
    %v680 = vunpack.c.l.b16 %v358
    %v681 = vunpack.c.l.b16 %v359
    %v682 = vunpack.c.h.b16 %v359
    %v683 = vunpack.c.l.b16 %v360
    %v684 = vunpack.c.l.b16 %v361
    %v685 = vunpack.c.h.b16 %v361
    %v686 = vunpack.c.l.b16 %v362
    %v687 = vunpack.c.l.b16 %v363
    %v688 = vunpack.c.h.b16 %v363
    %v689 = vunpack.c.l.b16 %v364
    %v690 = vunpack.c.l.b16 %v365
    %v691 = vunpack.c.h.b16 %v365
    %v692 = vunpack.c.l.b16 %v366
    %v693 = vunpack.c.l.b16 %v367
    %v694 = vunpack.c.h.b16 %v367
    %v695 = vunpack.c.l.b16 %v368
    %v696 = vunpack.c.l.b16 %v369
    %v697 = vunpack.c.h.b16 %v369
    %v698 = vunpack.c.l.b16 %v370
    %v699 = vunpack.c.l.b16 %v371
    %v700 = vunpack.c.h.b16 %v371
    %v701 = vunpack.c.l.b16 %v372
    %v702 = vunpack.c.l.b16 %v373
    %v703 = vunpack.c.h.b16 %v373
    %v704 = vunpack.c.l.b16 %v374
    %v705 = vunpack.c.l.b16 %v375
    %v706 = vunpack.c.h.b16 %v375
    %v707 = vunpack.c.l.b16 %v376
    %v708 = vunpack.c.l.b16 %v377
    %v709 = vunpack.c.h.b16 %v377
    %v710 = vunpack.c.l.b16 %v378
    %v711 = vunpack.c.l.b16 %v379
    %v712 = vunpack.c.h.b16 %v379
    %v713 = vunpack.c.l.b16 %v380
    %v714 = vunpack.c.l.b16 %v381
    %v715 = vunpack.c.h.b16 %v381
    %v716 = vunpack.c.l.b16 %v382
    %v717 = vunpack.c.l.b16 %v383
    %v718 = vunpack.c.h.b16 %v383
    %v719 = vunpack.c.l.b16 %v384
    %v720 = vunpack.c.l.b16 %v385
    %v721 = vunpack.c.h.b16 %v385
    %v722 = vunpack.c.l.b16 %v386
    %v723 = vunpack.c.l.b16 %v387
    %v724 = vunpack.c.h.b16 %v387
    %v725 = vunpack.c.l.b16 %v388
    %v726 = vpack.c.b16 %v537, %v534
    %v727 = vpack.c.b16 %v538, %v535
    %v728 = vpack.c.b16 %v539, %v536
    %v729 = vpack.c.b16 %v543, %v540
    %v730 = vpack.c.b16 %v544, %v541
    %v731 = vpack.c.b16 %v545, %v542
    %v732 = vpack.c.b16 %v549, %v546
    %v733 = vpack.c.b16 %v550, %v547
    %v734 = vpack.c.b16 %v551, %v548
    %v735 = vpack.c.b16 %v555, %v552
    %v736 = vpack.c.b16 %v556, %v553
    %v737 = vpack.c.b16 %v557, %v554
    %v738 = vpack.c.b16 %v561, %v558
    %v739 = vpack.c.b16 %v562, %v559
    %v740 = vpack.c.b16 %v563, %v560
    %v741 = vpack.c.b16 %v567, %v564
    %v742 = vpack.c.b16 %v568, %v565
    %v743 = vpack.c.b16 %v569, %v566
    %v744 = vpack.c.b16 %v573, %v570
    %v745 = vpack.c.b16 %v574, %v571
    %v746 = vpack.c.b16 %v575, %v572
    %v747 = vpack.c.b16 %v579, %v576
    %v748 = vpack.c.b16 %v580, %v577
    %v749 = vpack.c.b16 %v581, %v578
    %v750 = vpack.c.b16 %v585, %v582
    %v751 = vpack.c.b16 %v586, %v583
    %v752 = vpack.c.b16 %v587, %v584
    %v753 = vpack.c.b16 %v591, %v588
    %v754 = vpack.c.b16 %v592, %v589
    %v755 = vpack.c.b16 %v593, %v590
    %v756 = vpack.c.b16 %v597, %v594
    %v757 = vpack.c.b16 %v598, %v595
    %v758 = vpack.c.b16 %v599, %v596
    %v759 = vpack.c.b16 %v603, %v600
    %v760 = vpack.c.b16 %v604, %v601
    %v761 = vpack.c.b16 %v605, %v602
    %v762 = vpack.c.b16 %v609, %v606
    %v763 = vpack.c.b16 %v610, %v607
    %v764 = vpack.c.b16 %v611, %v608
    %v765 = vpack.c.b16 %v615, %v612
    %v766 = vpack.c.b16 %v616, %v613
    %v767 = vpack.c.b16 %v617, %v614
    %v768 = vpack.c.b16 %v621, %v618
    %v769 = vpack.c.b16 %v622, %v619
    %v770 = vpack.c.b16 %v623, %v620
    %v771 = vpack.c.b16 %v627, %v624
    %v772 = vpack.c.b16 %v628, %v625
    %v773 = vpack.c.b16 %v629, %v626
    %v774 = vpack.c.b16 %v633, %v630
    %v775 = vpack.c.b16 %v634, %v631
    %v776 = vpack.c.b16 %v635, %v632
    %v777 = vpack.c.b16 %v639, %v636
    %v778 = vpack.c.b16 %v640, %v637
    %v779 = vpack.c.b16 %v641, %v638
    %v780 = vpack.c.b16 %v645, %v642
    %v781 = vpack.c.b16 %v646, %v643
    %v782 = vpack.c.b16 %v647, %v644
    %v783 = vpack.c.b16 %v651, %v648
    %v784 = vpack.c.b16 %v652, %v649
    %v785 = vpack.c.b16 %v653, %v650
    %v786 = vpack.c.b16 %v657, %v654
    %v787 = vpack.c.b16 %v658, %v655
    %v788 = vpack.c.b16 %v659, %v656
    %v789 = vpack.c.b16 %v663, %v660
    %v790 = vpack.c.b16 %v664, %v661
    %v791 = vpack.c.b16 %v665, %v662
    %v792 = vpack.c.b16 %v669, %v666
    %v793 = vpack.c.b16 %v670, %v667
    %v794 = vpack.c.b16 %v671, %v668
    %v795 = vpack.c.b16 %v675, %v672
    %v796 = vpack.c.b16 %v676, %v673
    %v797 = vpack.c.b16 %v677, %v674
    %v798 = vpack.c.b16 %v681, %v678
    %v799 = vpack.c.b16 %v682, %v679
    %v800 = vpack.c.b16 %v683, %v680
    %v801 = vpack.c.b16 %v687, %v684
    %v802 = vpack.c.b16 %v688, %v685
    %v803 = vpack.c.b16 %v689, %v686
    %v804 = vpack.c.b16 %v693, %v690
    %v805 = vpack.c.b16 %v694, %v691
    %v806 = vpack.c.b16 %v695, %v692
    %v807 = vpack.c.b16 %v699, %v696
    %v808 = vpack.c.b16 %v700, %v697
    %v809 = vpack.c.b16 %v701, %v698
    %v810 = vpack.c.b16 %v705, %v702
    %v811 = vpack.c.b16 %v706, %v703
    %v812 = vpack.c.b16 %v707, %v704
    %v813 = vpack.c.b16 %v711, %v708
    %v814 = vpack.c.b16 %v712, %v709
    %v815 = vpack.c.b16 %v713, %v710
    %v816 = vpack.c.b16 %v717, %v714
    %v817 = vpack.c.b16 %v718, %v715
    %v818 = vpack.c.b16 %v719, %v716
    %v819 = vpack.c.b16 %v723, %v720
    %v820 = vpack.c.b16 %v724, %v721
    %v821 = vpack.c.b16 %v725, %v722
    %918 = vmatprep.subr.bf16.mxu0 %v748
    %919 = vmatpush1.bf16.msra.mxu0 %v747
    %920 = vmatprep.subr.bf16.mxu0 %v745
    %921 = vmatpush1.bf16.msra.mxu0 %v744
    %922 = vmatprep.subr.bf16.mxu0 %v742
    %923 = vmatpush1.bf16.msra.mxu0 %v741
    %924 = vmatprep.subr.bf16.mxu0 %v739
    %925 = vmatpush1.bf16.msra.mxu0 %v738
    %926 = vmatprep.subr.bf16.mxu0 %v736
    %927 = vmatpush1.bf16.msra.mxu0 %v735
    %928 = vmatprep.subr.bf16.mxu0 %v733
    %929 = vmatpush1.bf16.msra.mxu0 %v732
    %930 = vmatprep.subr.bf16.mxu0 %v730
    %931 = vmatpush1.bf16.msra.mxu0 %v729
    %932 = vmatprep.subr.bf16.mxu0 %v727
    %933 = vmatpush1.bf16.msra.mxu0 %v726
    %934 = vmatprep.subr.bf16.mxu0 %v772
    %935 = vmatpush2.bf16.msra.mxu0 %v771
    %936 = vmatprep.subr.bf16.mxu0 %v769
    %937 = vmatpush2.bf16.msra.mxu0 %v768
    %938 = vmatprep.subr.bf16.mxu0 %v766
    %939 = vmatpush2.bf16.msra.mxu0 %v765
    %940 = vmatprep.subr.bf16.mxu0 %v763
    %941 = vmatpush2.bf16.msra.mxu0 %v762
    %942 = vmatprep.subr.bf16.mxu0 %v760
    %943 = vmatpush2.bf16.msra.mxu0 %v759
    %944 = vmatprep.subr.bf16.mxu0 %v757
    %945 = vmatpush2.bf16.msra.mxu0 %v756
    %946 = vmatprep.subr.bf16.mxu0 %v754
    %947 = vmatpush2.bf16.msra.mxu0 %v753
    %948 = vmatprep.subr.bf16.mxu0 %v751
    %949 = vmatpush2.bf16.msra.mxu0 %v750
    %950 = vmatprep.mubr.bf16.mxu0 %v258
    %951 = vmatmul.mubr.bf16.gmra.mxu0 %v257
    %v952 = vpop.f32.mrf.mxu0
    %v953 = vadd.f32 %v394, %v952
    %v954 = vpop.f32.mrf.mxu0
    %v955 = vadd.f32 %v398, %v954
    %v956 = vpop.f32.mrf.mxu0
    %v957 = vpop.f32.mrf.mxu0
    %958 = vdwg.mxu0
    %959 = vmatprep.subr.bf16.mxu0 %v796
    %960 = vmatpush1.bf16.msra.mxu0 %v795
    %961 = vmatprep.subr.bf16.mxu0 %v793
    %962 = vmatpush1.bf16.msra.mxu0 %v792
    %963 = vmatprep.subr.bf16.mxu0 %v790
    %964 = vmatpush1.bf16.msra.mxu0 %v789
    %965 = vmatprep.subr.bf16.mxu0 %v787
    %966 = vmatpush1.bf16.msra.mxu0 %v786
    %967 = vmatprep.subr.bf16.mxu0 %v784
    %968 = vmatpush1.bf16.msra.mxu0 %v783
    %969 = vmatprep.subr.bf16.mxu0 %v781
    %970 = vmatpush1.bf16.msra.mxu0 %v780
    %971 = vmatprep.subr.bf16.mxu0 %v778
    %972 = vmatpush1.bf16.msra.mxu0 %v777
    %973 = vmatprep.subr.bf16.mxu0 %v775
    %974 = vmatpush1.bf16.msra.mxu0 %v774
    %975 = vmatprep.subr.bf16.mxu0 %v820
    %976 = vmatpush2.bf16.msra.mxu0 %v819
    %977 = vmatprep.subr.bf16.mxu0 %v817
    %978 = vmatpush2.bf16.msra.mxu0 %v816
    %979 = vmatprep.subr.bf16.mxu0 %v814
    %980 = vmatpush2.bf16.msra.mxu0 %v813
    %981 = vmatprep.subr.bf16.mxu0 %v811
    %982 = vmatpush2.bf16.msra.mxu0 %v810
    %983 = vmatprep.subr.bf16.mxu0 %v808
    %984 = vmatpush2.bf16.msra.mxu0 %v807
    %985 = vmatprep.subr.bf16.mxu0 %v805
    %986 = vmatpush2.bf16.msra.mxu0 %v804
    %987 = vmatprep.subr.bf16.mxu0 %v802
    %988 = vmatpush2.bf16.msra.mxu0 %v801
    %989 = vmatprep.subr.bf16.mxu0 %v799
    %990 = vmatpush2.bf16.msra.mxu0 %v798
    %991 = vmatprep.mubr.bf16.mxu0 %v260
    %992 = vmatmul.mubr.bf16.gmra.mxu0 %v259
    %v993 = vpop.f32.mrf.mxu0
    %v994 = vadd.f32 %v953, %v993
    %v995 = vpop.f32.mrf.mxu0
    %v996 = vadd.f32 %v955, %v995
    %v997 = vpop.f32.mrf.mxu0
    %v998 = vpop.f32.mrf.mxu0
    %999 = vdwg.mxu0
    %1000 = vmatprep.subr.bf16.mxu0 0
    %1001 = vmatpush1.bf16.msra.mxu0 %v749
    %1002 = vmatprep.subr.bf16.mxu0 0
    %1003 = vmatpush1.bf16.msra.mxu0 %v746
    %1004 = vmatprep.subr.bf16.mxu0 0
    %1005 = vmatpush1.bf16.msra.mxu0 %v743
    %1006 = vmatprep.subr.bf16.mxu0 0
    %1007 = vmatpush1.bf16.msra.mxu0 %v740
    %1008 = vmatprep.subr.bf16.mxu0 0
    %1009 = vmatpush1.bf16.msra.mxu0 %v737
    %1010 = vmatprep.subr.bf16.mxu0 0
    %1011 = vmatpush1.bf16.msra.mxu0 %v734
    %1012 = vmatprep.subr.bf16.mxu0 0
    %1013 = vmatpush1.bf16.msra.mxu0 %v731
    %1014 = vmatprep.subr.bf16.mxu0 0
    %1015 = vmatpush1.bf16.msra.mxu0 %v728
    %1016 = vmatprep.subr.bf16.mxu0 0
    %1017 = vmatpush2.bf16.msra.mxu0 %v773
    %1018 = vmatprep.subr.bf16.mxu0 0
    %1019 = vmatpush2.bf16.msra.mxu0 %v770
    %1020 = vmatprep.subr.bf16.mxu0 0
    %1021 = vmatpush2.bf16.msra.mxu0 %v767
    %1022 = vmatprep.subr.bf16.mxu0 0
    %1023 = vmatpush2.bf16.msra.mxu0 %v764
    %1024 = vmatprep.subr.bf16.mxu0 0
    %1025 = vmatpush2.bf16.msra.mxu0 %v761
    %1026 = vmatprep.subr.bf16.mxu0 0
    %1027 = vmatpush2.bf16.msra.mxu0 %v758
    %1028 = vmatprep.subr.bf16.mxu0 0
    %1029 = vmatpush2.bf16.msra.mxu0 %v755
    %1030 = vmatprep.subr.bf16.mxu0 0
    %1031 = vmatpush2.bf16.msra.mxu0 %v752
    %1032 = vmatprep.mubr.bf16.mxu0 %v258
    %1033 = vmatmul.mubr.bf16.gmra.mxu0 %v257
    %v1034 = vpop.f32.mrf.mxu0
    %v1035 = vadd.f32 %v402, %v1034
    %v1036 = vpop.f32.mrf.mxu0
    %v1037 = vpop.f32.mrf.mxu0
    %v1038 = vpop.f32.mrf.mxu0
    %1039 = vdwg.mxu0
    %1040 = vmatprep.subr.bf16.mxu0 0
    %1041 = vmatpush1.bf16.msra.mxu0 %v797
    %1042 = vmatprep.subr.bf16.mxu0 0
    %1043 = vmatpush1.bf16.msra.mxu0 %v794
    %1044 = vmatprep.subr.bf16.mxu0 0
    %1045 = vmatpush1.bf16.msra.mxu0 %v791
    %1046 = vmatprep.subr.bf16.mxu0 0
    %1047 = vmatpush1.bf16.msra.mxu0 %v788
    %1048 = vmatprep.subr.bf16.mxu0 0
    %1049 = vmatpush1.bf16.msra.mxu0 %v785
    %1050 = vmatprep.subr.bf16.mxu0 0
    %1051 = vmatpush1.bf16.msra.mxu0 %v782
    %1052 = vmatprep.subr.bf16.mxu0 0
    %1053 = vmatpush1.bf16.msra.mxu0 %v779
    %1054 = vmatprep.subr.bf16.mxu0 0
    %1055 = vmatpush1.bf16.msra.mxu0 %v776
    %1056 = vmatprep.subr.bf16.mxu0 0
    %1057 = vmatpush2.bf16.msra.mxu0 %v821
    %1058 = vmatprep.subr.bf16.mxu0 0
    %1059 = vmatpush2.bf16.msra.mxu0 %v818
    %1060 = vmatprep.subr.bf16.mxu0 0
    %1061 = vmatpush2.bf16.msra.mxu0 %v815
    %1062 = vmatprep.subr.bf16.mxu0 0
    %1063 = vmatpush2.bf16.msra.mxu0 %v812
    %1064 = vmatprep.subr.bf16.mxu0 0
    %1065 = vmatpush2.bf16.msra.mxu0 %v809
    %1066 = vmatprep.subr.bf16.mxu0 0
    %1067 = vmatpush2.bf16.msra.mxu0 %v806
    %1068 = vmatprep.subr.bf16.mxu0 0
    %1069 = vmatpush2.bf16.msra.mxu0 %v803
    %1070 = vmatprep.subr.bf16.mxu0 0
    %1071 = vmatpush2.bf16.msra.mxu0 %v800
    %1072 = vmatprep.mubr.bf16.mxu0 %v260
    %1073 = vmatmul.mubr.bf16.gmra.mxu0 %v259
    %v1074 = vpop.f32.mrf.mxu0
    %v1075 = vadd.f32 %v1035, %v1074
    %v1076 = vpop.f32.mrf.mxu0
    %v1077 = vpop.f32.mrf.mxu0
    %v1078 = vpop.f32.mrf.mxu0
    %1079 = vdwg.mxu0
    %v1080 = vmax.f32 %v994, 0.0
    %v1081 = vmax.f32 %v996, 0.0
    %v1082 = vmax.f32 %v1075, 0.0
    %v1083 = vpack.c.bf16 %v1080, %v1080
    %v1084 = vpack.c.bf16 %v1081, %v1081
    %v1085 = vpack.c.bf16 %v1082, %v1082
    %v1089 = vcombine.low %v1083, %v1084
    %v1091 = vunpack.c.l.s4 1966171168
    %v1092 = vunpack.c.0.s8 %v1091
    %v1093 = vlaneseq
    %v1094 = vshrl.u32 %v1093, 7
    %v1095 = vsub.s32 %v1092, %v1094
    %v1096 = vrot.slane %v1089, %v1095
    %v1098 = vunpack.c.l.s4 1966171168
    %v1099 = vunpack.c.0.s8 %v1098
    %v1100 = vlaneseq
    %v1101 = vshrl.u32 %v1100, 7
    %v1102 = vsub.s32 %v1099, %v1101
    %v1103 = vrot.slane %v1085, %v1102
    %v1104 = vcombine.low %v1096, %v1103
    %v1106 = vunpack.c.l.s4 1966171168
    %v1107 = vunpack.c.0.s8 %v1106
    %v1108 = vlaneseq
    %v1109 = vshrl.u32 %v1108, 7
    %v1110 = vsub.s32 %v1107, %v1109
    %v1111 = vrot.slane %v1104, %v1110
    %vm1113 = vcmask 1040384
    %vm1114 = vcmask 1041409
    %vm1115 = vmor %vm1114, %vm1113
    %vm1116 = vcmask 354306
    %vm1117 = vmor %vm1116, %vm1115
    %1118 = vst.msk [vmem:[#allocation12] sm:$0x7] %vm1117, %v1111
    %v1119 = vld [vmem:[#allocation10] sm:$0xf]
    %v1120 = vld [vmem:[#allocation10 + $0x4] sm:$0xf]
    %v1121 = vld [vmem:[#allocation10 + $0x8] sm:$0xf]
    %v1122 = vld [vmem:[#allocation10 + $0xc] sm:$0xf]
    %v1123 = vld [vmem:[#allocation10 + $0x10] sm:$0xf]
    %v1124 = vld [vmem:[#allocation10 + $0x14] sm:$0xf]
    %v1125 = vld [vmem:[#allocation10 + $0x18] sm:$0xf]
    %v1126 = vld [vmem:[#allocation10 + $0x1c] sm:$0xf]
    %v1127 = vld [vmem:[#allocation10 + $0x20] sm:$0xf]
    %v1128 = vld [vmem:[#allocation10 + $0x24] sm:$0xf]
    %v1129 = vld [vmem:[#allocation10 + $0x28] sm:$0xf]
    %v1130 = vld [vmem:[#allocation10 + $0x2c] sm:$0xf]
    %v1131 = vld [vmem:[#allocation10 + $0x30] sm:$0xf]
    %v1132 = vld [vmem:[#allocation10 + $0x34] sm:$0xf]
    %v1133 = vld [vmem:[#allocation10 + $0x38] sm:$0xf]
    %v1134 = vld [vmem:[#allocation10 + $0x3c] sm:$0xf]
    %v1135 = vld [vmem:[#allocation10 + $0x40] sm:$0xf]
    %v1136 = vld [vmem:[#allocation10 + $0x44] sm:$0xf]
    %v1137 = vld [vmem:[#allocation10 + $0x48] sm:$0xf]
    %v1138 = vld [vmem:[#allocation10 + $0x4c] sm:$0xf]
    %v1139 = vld [vmem:[#allocation10 + $0x50] sm:$0xf]
    %v1140 = vld [vmem:[#allocation10 + $0x54] sm:$0xf]
    %v1141 = vld [vmem:[#allocation10 + $0x58] sm:$0xf]
    %v1142 = vld [vmem:[#allocation10 + $0x5c] sm:$0xf]
    %v1143 = vld [vmem:[#allocation10 + $0x60] sm:$0xf]
    %v1144 = vld [vmem:[#allocation10 + $0x64] sm:$0xf]
    %v1145 = vld [vmem:[#allocation10 + $0x68] sm:$0xf]
    %v1146 = vld [vmem:[#allocation10 + $0x6c] sm:$0xf]
    %v1147 = vld [vmem:[#allocation10 + $0x70] sm:$0xf]
    %v1148 = vld [vmem:[#allocation10 + $0x74] sm:$0xf]
    %v1149 = vld [vmem:[#allocation10 + $0x78] sm:$0xf]
    %v1150 = vld [vmem:[#allocation10 + $0x7c] sm:$0xf]
    %v1151 = vld [vmem:[#allocation10 + $0x80] sm:$0xf]
    %v1152 = vld [vmem:[#allocation10 + $0x84] sm:$0xf]
    %v1153 = vld [vmem:[#allocation10 + $0x88] sm:$0xf]
    %v1154 = vld [vmem:[#allocation10 + $0x8c] sm:$0xf]
    %v1155 = vld [vmem:[#allocation10 + $0x90] sm:$0xf]
    %v1156 = vld [vmem:[#allocation10 + $0x94] sm:$0xf]
    %v1157 = vld [vmem:[#allocation10 + $0x98] sm:$0xf]
    %v1158 = vld [vmem:[#allocation10 + $0x9c] sm:$0xf]
    %v1159 = vld [vmem:[#allocation10 + $0xa0] sm:$0xf]
    %v1160 = vld [vmem:[#allocation10 + $0xa4] sm:$0xf]
    %v1161 = vld [vmem:[#allocation10 + $0xa8] sm:$0xf]
    %v1162 = vld [vmem:[#allocation10 + $0xac] sm:$0xf]
    %v1163 = vld [vmem:[#allocation10 + $0xb0] sm:$0xf]
    %v1164 = vld [vmem:[#allocation10 + $0xb4] sm:$0xf]
    %v1165 = vld [vmem:[#allocation10 + $0xb8] sm:$0xf]
    %v1166 = vld [vmem:[#allocation10 + $0xbc] sm:$0xf]
    %v1215 = vunpack.c.l.b16 %v1119
    %v1216 = vunpack.c.l.b16 %v1120
    %v1217 = vunpack.c.l.b16 %v1121
    %v1218 = vunpack.c.l.b16 %v1122
    %v1219 = vunpack.c.l.b16 %v1123
    %v1220 = vunpack.c.l.b16 %v1124
    %v1221 = vunpack.c.l.b16 %v1125
    %v1222 = vunpack.c.l.b16 %v1126
    %v1223 = vunpack.c.l.b16 %v1127
    %v1224 = vunpack.c.l.b16 %v1128
    %v1225 = vunpack.c.l.b16 %v1129
    %v1226 = vunpack.c.l.b16 %v1130
    %v1227 = vunpack.c.l.b16 %v1131
    %v1228 = vunpack.c.l.b16 %v1132
    %v1229 = vunpack.c.l.b16 %v1133
    %v1230 = vunpack.c.l.b16 %v1134
    %v1231 = vunpack.c.l.b16 %v1135
    %v1232 = vunpack.c.l.b16 %v1136
    %v1233 = vunpack.c.l.b16 %v1137
    %v1234 = vunpack.c.l.b16 %v1138
    %v1235 = vunpack.c.l.b16 %v1139
    %v1236 = vunpack.c.l.b16 %v1140
    %v1237 = vunpack.c.l.b16 %v1141
    %v1238 = vunpack.c.l.b16 %v1142
    %v1239 = vunpack.c.l.b16 %v1143
    %v1240 = vunpack.c.l.b16 %v1144
    %v1241 = vunpack.c.l.b16 %v1145
    %v1242 = vunpack.c.l.b16 %v1146
    %v1243 = vunpack.c.l.b16 %v1147
    %v1244 = vunpack.c.l.b16 %v1148
    %v1245 = vunpack.c.l.b16 %v1149
    %v1246 = vunpack.c.l.b16 %v1150
    %v1247 = vunpack.c.l.b16 %v1151
    %v1248 = vunpack.c.l.b16 %v1152
    %v1249 = vunpack.c.l.b16 %v1153
    %v1250 = vunpack.c.l.b16 %v1154
    %v1251 = vunpack.c.l.b16 %v1155
    %v1252 = vunpack.c.l.b16 %v1156
    %v1253 = vunpack.c.l.b16 %v1157
    %v1254 = vunpack.c.l.b16 %v1158
    %v1255 = vunpack.c.l.b16 %v1159
    %v1256 = vunpack.c.l.b16 %v1160
    %v1257 = vunpack.c.l.b16 %v1161
    %v1258 = vunpack.c.l.b16 %v1162
    %v1259 = vunpack.c.l.b16 %v1163
    %v1260 = vunpack.c.l.b16 %v1164
    %v1261 = vunpack.c.l.b16 %v1165
    %v1262 = vunpack.c.l.b16 %v1166
    %v1263 = vpack.c.b16 %v1216, %v1215
    %v1264 = vpack.c.b16 %v1218, %v1217
    %v1265 = vpack.c.b16 %v1220, %v1219
    %v1266 = vpack.c.b16 %v1222, %v1221
    %v1267 = vpack.c.b16 %v1224, %v1223
    %v1268 = vpack.c.b16 %v1226, %v1225
    %v1269 = vpack.c.b16 %v1228, %v1227
    %v1270 = vpack.c.b16 %v1230, %v1229
    %v1271 = vpack.c.b16 %v1232, %v1231
    %v1272 = vpack.c.b16 %v1234, %v1233
    %v1273 = vpack.c.b16 %v1236, %v1235
    %v1274 = vpack.c.b16 %v1238, %v1237
    %v1275 = vpack.c.b16 %v1240, %v1239
    %v1276 = vpack.c.b16 %v1242, %v1241
    %v1277 = vpack.c.b16 %v1244, %v1243
    %v1278 = vpack.c.b16 %v1246, %v1245
    %v1279 = vpack.c.b16 %v1248, %v1247
    %v1280 = vpack.c.b16 %v1250, %v1249
    %v1281 = vpack.c.b16 %v1252, %v1251
    %v1282 = vpack.c.b16 %v1254, %v1253
    %v1283 = vpack.c.b16 %v1256, %v1255
    %v1284 = vpack.c.b16 %v1258, %v1257
    %v1285 = vpack.c.b16 %v1260, %v1259
    %v1286 = vpack.c.b16 %v1262, %v1261
    %1311 = vmatprep.subr.bf16.mxu0 0
    %1312 = vmatpush1.bf16.msra.mxu0 %v1270
    %1313 = vmatprep.subr.bf16.mxu0 0
    %1314 = vmatpush1.bf16.msra.mxu0 %v1269
    %1315 = vmatprep.subr.bf16.mxu0 0
    %1316 = vmatpush1.bf16.msra.mxu0 %v1268
    %1317 = vmatprep.subr.bf16.mxu0 0
    %1318 = vmatpush1.bf16.msra.mxu0 %v1267
    %1319 = vmatprep.subr.bf16.mxu0 0
    %1320 = vmatpush1.bf16.msra.mxu0 %v1266
    %1321 = vmatprep.subr.bf16.mxu0 0
    %1322 = vmatpush1.bf16.msra.mxu0 %v1265
    %1323 = vmatprep.subr.bf16.mxu0 0
    %1324 = vmatpush1.bf16.msra.mxu0 %v1264
    %1325 = vmatprep.subr.bf16.mxu0 0
    %1326 = vmatpush1.bf16.msra.mxu0 %v1263
    %1327 = vmatprep.subr.bf16.mxu0 0
    %1328 = vmatpush2.bf16.msra.mxu0 %v1278
    %1329 = vmatprep.subr.bf16.mxu0 0
    %1330 = vmatpush2.bf16.msra.mxu0 %v1277
    %1331 = vmatprep.subr.bf16.mxu0 0
    %1332 = vmatpush2.bf16.msra.mxu0 %v1276
    %1333 = vmatprep.subr.bf16.mxu0 0
    %1334 = vmatpush2.bf16.msra.mxu0 %v1275
    %1335 = vmatprep.subr.bf16.mxu0 0
    %1336 = vmatpush2.bf16.msra.mxu0 %v1274
    %1337 = vmatprep.subr.bf16.mxu0 0
    %1338 = vmatpush2.bf16.msra.mxu0 %v1273
    %1339 = vmatprep.subr.bf16.mxu0 0
    %1340 = vmatpush2.bf16.msra.mxu0 %v1272
    %1341 = vmatprep.subr.bf16.mxu0 0
    %1342 = vmatpush2.bf16.msra.mxu0 %v1271
    %1343 = vmatprep.mubr.bf16.mxu0 %v1084
    %1344 = vmatmul.mubr.bf16.gmra.mxu0 %v1083
    %v1345 = vpop.f32.mrf.mxu0
    %v1346 = vadd.f32 0.0, %v1345
    %v1347 = vpop.f32.mrf.mxu0
    %v1348 = vpop.f32.mrf.mxu0
    %v1349 = vpop.f32.mrf.mxu0
    %1350 = vdwg.mxu0
    %1351 = vmatprep.subr.bf16.mxu0 0
    %1352 = vmatpush1.bf16.msra.mxu0 %v1286
    %1353 = vmatprep.subr.bf16.mxu0 0
    %1354 = vmatpush1.bf16.msra.mxu0 %v1285
    %1355 = vmatprep.subr.bf16.mxu0 0
    %1356 = vmatpush1.bf16.msra.mxu0 %v1284
    %1357 = vmatprep.subr.bf16.mxu0 0
    %1358 = vmatpush1.bf16.msra.mxu0 %v1283
    %1359 = vmatprep.subr.bf16.mxu0 0
    %1360 = vmatpush1.bf16.msra.mxu0 %v1282
    %1361 = vmatprep.subr.bf16.mxu0 0
    %1362 = vmatpush1.bf16.msra.mxu0 %v1281
    %1363 = vmatprep.subr.bf16.mxu0 0
    %1364 = vmatpush1.bf16.msra.mxu0 %v1280
    %1365 = vmatprep.subr.bf16.mxu0 0
    %1366 = vmatpush1.bf16.msra.mxu0 %v1279
    %1367 = vmatprep.subr.bf16.mxu0 0
    %1368 = vmatpush2.bf16.msra.mxu0 0
    %1369 = vmatprep.subr.bf16.mxu0 0
    %1370 = vmatpush2.bf16.msra.mxu0 0
    %1371 = vmatprep.subr.bf16.mxu0 0
    %1372 = vmatpush2.bf16.msra.mxu0 0
    %1373 = vmatprep.subr.bf16.mxu0 0
    %1374 = vmatpush2.bf16.msra.mxu0 0
    %1375 = vmatprep.subr.bf16.mxu0 0
    %1376 = vmatpush2.bf16.msra.mxu0 0
    %1377 = vmatprep.subr.bf16.mxu0 0
    %1378 = vmatpush2.bf16.msra.mxu0 0
    %1379 = vmatprep.subr.bf16.mxu0 0
    %1380 = vmatpush2.bf16.msra.mxu0 0
    %1381 = vmatprep.subr.bf16.mxu0 0
    %1382 = vmatpush2.bf16.msra.mxu0 0
    %1383 = vmatprep.mubr.bf16.mxu0 0
    %1384 = vmatmul.mubr.bf16.gmra.mxu0 %v1085
    %v1385 = vpop.f32.mrf.mxu0
    %v1386 = vadd.f32 %v1346, %v1385
    %v1387 = vpop.f32.mrf.mxu0
    %v1388 = vpop.f32.mrf.mxu0
    %v1389 = vpop.f32.mrf.mxu0
    %1390 = vdwg.mxu0
    %v1391 = vld [vmem:[%s6] sm:$0x1]
    %v1393 = vlaneseq
    %v1394 = vshrl.u32 %v1393, 7
    %v1395 = vsub.s32 0, %v1394
    %v1396 = vrot.slane %v1391, %v1395
    %v1398 = vadd.f32 %v1386, %v1396
    %v1399 = vtanh.pop %v1398
    %vm1400 = vcmask 25600
    %1401 = vst.msk [vmem:[#allocation11] sm:$0x3] %vm1400, %v1399
    // Predicated region
    $region50: #{tpu_custom_call.1} parent=1 // pred_check
      _
    $region51: #{tpu_custom_call.1} parent=1 // pred_check_branch
      %1403 = sbr.rel (0) target = $region53
    $region52: #{tpu_custom_call.1} parent=1 // pred_region
      %s1405 = ssub.s32 32, 32
      %1406 = vsyncadd [#allocation4], %s1405
      %s1408 = sshll.u32 [#allocation11], 4
      %s1409 = int_to_ptr.vmem [resolvable:$true] %s1408
      %1411 = dma.vmem_to_hbm [thread:$0]  %s1409, 32, %s7, [#allocation4]
    $region53: #{tpu_custom_call.1} parent=1 // pred_fallthru
      _
    // Predicated region
    $region54: #{tpu_custom_call.1} parent=1 // pred_check
      _
    $region55: #{tpu_custom_call.1} parent=1 // pred_check_branch
      %1413 = sbr.rel (0) target = $region57
    $region56: #{tpu_custom_call.1} parent=1 // pred_region
      %s1415 = ssub.s32 48, 48
      %1416 = vsyncadd [#allocation13], %s1415
      %s1418 = sshll.u32 [#allocation12], 4
      %s1419 = int_to_ptr.vmem [resolvable:$true] %s1418
      %1421 = dma.vmem_to_hbm [thread:$0]  %s1419, 48, %s8, [#allocation13]
    $region57: #{tpu_custom_call.1} parent=1 // pred_fallthru
      _
    // Predicated region
    $region58: #{tpu_custom_call.1} parent=1 // pred_check
      _
    $region59: #{tpu_custom_call.1} parent=1 // pred_check_branch
      %1423 = sbr.rel (0) target = $region61
    $region60: #{tpu_custom_call.1} parent=1 // pred_region
      %1424 = dma.done [#allocation4], 32
    $region61: #{tpu_custom_call.1} parent=1 // pred_fallthru
      _
    // Predicated region
    $region62: #{tpu_custom_call.1} parent=1 // pred_check
      _
    $region63: #{tpu_custom_call.1} parent=1 // pred_check_branch
      %1426 = sbr.rel (0) target = $region65
    $region64: #{tpu_custom_call.1} parent=1 // pred_region
      %1427 = dma.done [#allocation13], 48
    $region65: #{tpu_custom_call.1} parent=1 // pred_fallthru
      _
    %1428 = vsyncpa [#allocation3], 1
    %1429 = vsyncpa [#allocation6], 1
    %1430 = vsyncpa [#allocation9], 1
    %1431 = vsyncpa [#allocation4], 1
    %1432 = vsyncpa [#allocation13], 1

</llo_original>
